<compile_context>
chip_gen: v7x
topology: tpu7x:2x2x1
jax: 0.10.0
libtpu: 0.0.40
codegen_flags: <defaults>
</compile_context>

<pallas_src>
import jax
import jax.numpy as jnp
from jax.experimental import pallas as pl
from jax.experimental.pallas import tpu as pltpu

C_IN = 3
C_OUT = 6
TN_MAX = 65536   # max lane tile along N (multiple of 128)
TB_MAX = 8       # max batch tile


def _cdiv(a, b):
    return -(-a // b)


def _round_up(a, m):
    return _cdiv(a, m) * m


def _conv1x1_relu_kernel(x_ref, wb_ref, o_ref):
    # x_ref : (TB, 3, TN)   batch tile; channels on sublanes, N on lanes
    # wb_ref: (6, 4)        packed [w[:,0] | w[:,1] | w[:,2] | bias]
    # o_ref : (TB, 6, TN)
    x = x_ref[...]
    wb = wb_ref[...]
    # y[b, c, n] = sum_k w[c, k] * x[b, k, n] + bias[c]  -- pure VPU broadcast-FMAs.
    acc = (wb[:, 0:1] * x[:, 0:1, :]
           + wb[:, 1:2] * x[:, 1:2, :]
           + wb[:, 2:3] * x[:, 2:3, :]
           + wb[:, 3:4])
    o_ref[...] = jnp.maximum(acc, 0.0)


def _vmem_capacity_bytes():
    """Physical VMEM of the current TPU generation (fallback: v7x's 64 MiB)."""
    try:
        info = pltpu.get_tpu_info()
        cap = getattr(info, "vmem_capacity_bytes", None)
        if cap:
            return int(cap)
    except Exception:
        pass
    return 64 << 20


def _largest_divisor_le(n, cap):
    for d in range(max(1, min(n, cap)), 0, -1):
        if n % d == 0:
            return d
    return 1


def _choose_tiles(B, N):
    """Pick (TB, TN, vmem_limit_bytes) from the device's VMEM capacity."""
    vmem_cap = _vmem_capacity_bytes()
    # Per-step double-buffered VMEM footprint (C dims pad to 8 sublanes):
    #   2 * (8 + 8) sublanes * 4 B * TB * TN = 128 * TB * TN bytes.
    # Keep it within ~1/4 of physical VMEM (<=16 MiB on v7x, <=32 MiB on v5e/v6e).
    budget = vmem_cap // 4

    tb = _largest_divisor_le(B, TB_MAX)
    max_tn = max(128, (budget // (128 * tb)) // 128 * 128)
    tn = min(_round_up(N, 128), TN_MAX, max_tn)

    # Megacore (v7x: 2 TensorCores): guarantee >= 2 grid steps along a
    # "parallel" axis whenever the problem is splittable.
    if _cdiv(B, tb) * _cdiv(N, tn) < 2:
        if _cdiv(N, 128) >= 2:
            tn = _round_up(_cdiv(N, 2), 128)
        elif B >= 2:
            tb = _largest_divisor_le(B, _cdiv(B, 2))

    vmem_limit = vmem_cap // 2  # well above our usage; raises v5e's 16 MiB default
    return tb, tn, vmem_limit


def posenet_forward(x, weight, bias):
    """Pallas implementation of PoseNet.forward.

    Args:
      x:      (B, 3, N) float32  -- PyTorch NCL layout.
      weight: (6, 3, 1) float32  -- Conv1d weight (out, in, kernel=1).
      bias:   (6,)      float32  -- Conv1d bias.
    Returns:
      (B, 6, N) float32 == relu(conv1d(x)).
    """
    B, c_in, N = x.shape
    assert c_in == C_IN

    # Pack weight columns and bias into one tiny operand: (6, 4).
    wb = jnp.concatenate([weight[:, :, 0], bias.reshape(C_OUT, 1)], axis=1)

    tb, tn, vmem_limit = _choose_tiles(B, N)
    grid = (_cdiv(B, tb), _cdiv(N, tn))   # partial final tiles handled by Pallas

    return pl.pallas_call(
        _conv1x1_relu_kernel,
        out_shape=jax.ShapeDtypeStruct((B, C_OUT, N), x.dtype),
        grid_spec=pltpu.PrefetchScalarGridSpec(
            num_scalar_prefetch=0,
            grid=grid,
            in_specs=[
                pl.BlockSpec((tb, C_IN, tn), lambda b, n: (b, 0, n)),
                pl.BlockSpec((C_OUT, 4), lambda b, n: (0, 0)),
            ],
            out_specs=pl.BlockSpec((tb, C_OUT, tn), lambda b, n: (b, 0, n)),
        ),
        compiler_params=pltpu.CompilerParams(
            dimension_semantics=("parallel", "parallel"),
            vmem_limit_bytes=vmem_limit,
        ),
    )(x, wb)


def _init_params(key):
    """Deterministic Conv1d(3, 6, 1) params (PyTorch-style uniform init)."""
    k_w, k_b = jax.random.split(key)
    bound = 1.0 / jnp.sqrt(float(C_IN * 1))                 # fan_in = 3 * kernel(1)
    weight = jax.random.uniform(k_w, (C_OUT, C_IN, 1), jnp.float32, -bound, bound)
    bias = jax.random.uniform(k_b, (C_OUT,), jnp.float32, -bound, bound)
    return weight, bias


if __name__ == "__main__":
    key = jax.random.PRNGKey(0)
    k_param, k_x = jax.random.split(key)

    num_points = 256                                        # PoseNet(num_points)
    B = 2
    weight, bias = _init_params(k_param)
    x = jax.random.normal(k_x, (B, C_IN, num_points), jnp.float32)

    out = posenet_forward(x, weight, bias)
    out = jax.block_until_ready(out)

    # pure-JAX elementwise reference (exact f32, no MXU precision ambiguity)
    ref = jax.nn.relu(
        jnp.sum(weight[None, :, :, 0:1] * x[:, None, :, :], axis=2)
        + bias[None, :, None]
    )
    assert out.shape == (B, C_OUT, num_points)
    assert jnp.allclose(out, ref, atol=1e-5, rtol=1e-5)

    print("KERNEL_OK")
</pallas_src>

<mosaic_0001>
module attributes {stable_mosaic.version = 11 : i64} {
  func.func @_conv1x1_relu_kernel(%arg0: i32, %arg1: i32, %arg2: memref<2x3x128xf32, #tpu.memory_space<vmem>>, %arg3: memref<6x4xf32, #tpu.memory_space<vmem>>, %arg4: memref<2x6x128xf32, #tpu.memory_space<vmem>>) attributes {dimension_semantics = [#tpu.dimension_semantics<parallel>, #tpu.dimension_semantics<parallel>], iteration_bounds = array<i64: 1, 2>, scalar_prefetch = 0 : i64, scratch_operands = 0 : i64, tpu.core_type = #tpu.core_type<tc>, window_params = [{transform_indices = @transform_0, window_bounds = array<i64: 2, 3, 128>}, {pipeline_mode = #tpu.pipeline_mode<synchronous>, transform_indices = @transform_1, window_bounds = array<i64: 6, 4>}, {transform_indices = @transform_2, window_bounds = array<i64: 2, 6, 128>}]} {
    %c0 = arith.constant 0 : index
    %c0_0 = arith.constant 0 : index
    %c0_1 = arith.constant 0 : index
    %0 = vector.load %arg2[%c0, %c0_0, %c0_1] : memref<2x3x128xf32, #tpu.memory_space<vmem>>, vector<2x3x128xf32>
    %c0_2 = arith.constant 0 : index
    %c0_3 = arith.constant 0 : index
    %1 = vector.load %arg3[%c0_2, %c0_3] : memref<6x4xf32, #tpu.memory_space<vmem>>, vector<6x4xf32>
    %2 = vector.extract_strided_slice %1 {offsets = [0, 0], sizes = [6, 1], strides = [1, 1]} : vector<6x4xf32> to vector<6x1xf32>
    %3 = vector.extract_strided_slice %0 {offsets = [0, 0, 0], sizes = [2, 1, 128], strides = [1, 1, 1]} : vector<2x3x128xf32> to vector<2x1x128xf32>
    %4 = vector.shape_cast %2 : vector<6x1xf32> to vector<1x6x1xf32>
    %5 = vector.broadcast %4 : vector<1x6x1xf32> to vector<2x6x128xf32>
    %6 = vector.broadcast %3 : vector<2x1x128xf32> to vector<2x6x128xf32>
    %7 = arith.mulf %5, %6 : vector<2x6x128xf32>
    %8 = vector.extract_strided_slice %1 {offsets = [0, 1], sizes = [6, 1], strides = [1, 1]} : vector<6x4xf32> to vector<6x1xf32>
    %9 = vector.extract_strided_slice %0 {offsets = [0, 1, 0], sizes = [2, 1, 128], strides = [1, 1, 1]} : vector<2x3x128xf32> to vector<2x1x128xf32>
    %10 = vector.shape_cast %8 : vector<6x1xf32> to vector<1x6x1xf32>
    %11 = vector.broadcast %10 : vector<1x6x1xf32> to vector<2x6x128xf32>
    %12 = vector.broadcast %9 : vector<2x1x128xf32> to vector<2x6x128xf32>
    %13 = arith.mulf %11, %12 : vector<2x6x128xf32>
    %14 = arith.addf %7, %13 : vector<2x6x128xf32>
    %15 = vector.extract_strided_slice %1 {offsets = [0, 2], sizes = [6, 1], strides = [1, 1]} : vector<6x4xf32> to vector<6x1xf32>
    %16 = vector.extract_strided_slice %0 {offsets = [0, 2, 0], sizes = [2, 1, 128], strides = [1, 1, 1]} : vector<2x3x128xf32> to vector<2x1x128xf32>
    %17 = vector.shape_cast %15 : vector<6x1xf32> to vector<1x6x1xf32>
    %18 = vector.broadcast %17 : vector<1x6x1xf32> to vector<2x6x128xf32>
    %19 = vector.broadcast %16 : vector<2x1x128xf32> to vector<2x6x128xf32>
    %20 = arith.mulf %18, %19 : vector<2x6x128xf32>
    %21 = arith.addf %14, %20 : vector<2x6x128xf32>
    %22 = vector.extract_strided_slice %1 {offsets = [0, 3], sizes = [6, 1], strides = [1, 1]} : vector<6x4xf32> to vector<6x1xf32>
    %23 = vector.shape_cast %22 : vector<6x1xf32> to vector<1x6x1xf32>
    %24 = vector.broadcast %23 : vector<1x6x1xf32> to vector<2x6x128xf32>
    %25 = arith.addf %21, %24 : vector<2x6x128xf32>
    %cst = arith.constant 0.000000e+00 : f32
    %26 = vector.broadcast %cst : f32 to vector<2x6x128xf32>
    %27 = arith.maximumf %25, %26 : vector<2x6x128xf32>
    %c0_4 = arith.constant 0 : index
    %c0_5 = arith.constant 0 : index
    %c0_6 = arith.constant 0 : index
    %28 = vector.load %arg4[%c0_4, %c0_5, %c0_6] : memref<2x6x128xf32, #tpu.memory_space<vmem>>, vector<2x6x128xf32>
    tpu.vector_store %arg4[%c0_4, %c0_5, %c0_6], %27 {strides = array<i32>} : memref<2x6x128xf32, #tpu.memory_space<vmem>>, vector<2x6x128xf32>,
    return
  }
  func.func @transform_0(%arg0: i32, %arg1: i32) -> (i32, i32, i32) {
    %c0_i32 = arith.constant 0 : i32
    %c0_i32_0 = arith.constant 0 : i32
    return %arg0, %c0_i32, %arg1 : i32, i32, i32
  }
  func.func @transform_1(%arg0: i32, %arg1: i32) -> (i32, i32) {
    %c0_i32 = arith.constant 0 : i32
    %c0_i32_0 = arith.constant 0 : i32
    %c0_i32_1 = arith.constant 0 : i32
    return %c0_i32, %c0_i32_0 : i32, i32
  }
  func.func @transform_2(%arg0: i32, %arg1: i32) -> (i32, i32, i32) {
    %c0_i32 = arith.constant 0 : i32
    %c0_i32_0 = arith.constant 0 : i32
    return %arg0, %c0_i32, %arg1 : i32, i32, i32
  }
}

</mosaic_0001>

<llo_original>
// kernel: tpu_custom_call.1
$region0: #{tpu_custom_call.1}
  #allocation0 [shape = 'u32[]', space=smem, size = 0x4, offset = 0x4, fixed_abs, tag = 'smem constant byte address 0x4 - core index']
  #allocation1 [shape = 'u32[144,128]{1,0:T(1,128)}', space=vmem, size = 0x12000, scoped, tag = 'internal scratch']
  %s0 = inlined_call_operand.vmem [shape: f32[2,3,256], index: 0, kind: input, shape index: {}]
  %s1 = inlined_call_operand.vmem [shape: f32[6,4], index: 1, kind: input, shape index: {}]
  %s2 = inlined_call_operand.vmem [shape: f32[2,6,256], index: 2, kind: output, shape index: {}]
  %s3 = sld [smem:[#allocation0]]
  $region116: #{tpu_custom_call.1} parent=0
    _
  %s5 = ssub.s32 1, %s3
  %s6 = scalar_select 0, %s5, %s3
  $region1: #{tpu_custom_call.1} parent=0
    #allocation2 [shape = 'u8[8192]{0}', space=vmem, size = 0x2000, scoped, tag = 'input window, operand 0']
    #allocation3 [shape = 'u8[16384]{0}', space=vmem, size = 0x4000, scoped, tag = 'output window, operand 0']
    loop: start=0, step=1, limit=4
    $region2: #{tpu_custom_call.1} parent=1 // loop_pre_header
      _
    $region3: #{tpu_custom_call.1} parent=1 // loop_header
      %s8 = sphi 0, %s12
      %p9 = scmp.ge.s32.totalorder %s8, 4
      %s15 = sphi 0, %s27
      %s16 = sphi 0, %s23
      %s17 = sphi 0, %s15
      %s18 = sphi 0, %s16
      %s19 = sphi 0, %s17
      %s20 = sphi 0, %s18
      %s32 = sphi 0, %s34
      %s35 = sphi 0, %s32
      %s36 = sphi 0, %s35
      %s52 = sphi 0, %s36
      %s56 = sphi 0, %s56
      %s58 = sphi 0, %s56
      %s59 = sphi 0, %s58
      %s73 = sphi 0, %s59
      %s81 = sphi 0, %s83
      %s84 = sphi 0, %s81
      %s85 = sphi 0, %s84
      %s101 = sphi 0, %s85
    $region4: #{tpu_custom_call.1} parent=1 // loop_header_branch
      %11 = sbr.rel (%p9) target = $region8
    $region5: #{tpu_custom_call.1} parent=1 // loop_body
      %s13 = ssub.s32 %s8, 1
      %s14 = ssub.s32 %s8, 2
      %s21 = sadd.s32 1, %s16
      %p22 = scmp.ge.s32.totalorder %s21, 2
      %s23 = scalar_select %p22, 0, %s21
      %s24 = sadd.s32 1, %s15
      %s25 = scalar_select %p22, %s24, %s15
      %p26 = scmp.ge.s32.totalorder %s25, 1
      %s27 = scalar_select %p26, 0, %s25
      %s28 = ssub.s32 %s15, %s27
      %s29 = ssub.s32 %s16, %s23
      %s30 = sor.u32 %s28, %s29
      %p31 = scmp.eq.s32.totalorder %s30, 0
      %s33 = sadd.s32 %s32, 1
      %s34 = scalar_select %p31, %s32, %s33
      %p37 = pneg %p31
      %p38 = scmp.eq.s32.totalorder %s8, 1
      %p39 = por %p37, %p38
      %p40 = scmp.ne.s32.totalorder %s32, %s35
      %p41 = scmp.eq.s32.totalorder %s8, 0
      %p42 = por %p40, %p41
      %p43 = scmp.ne.s32.totalorder %s32, %s35
      %p44 = scmp.eq.s32.totalorder %s13, 1
      %p45 = por %p43, %p44
      %p46 = scmp.ne.s32.totalorder %s35, %s36
      %p47 = scmp.eq.s32.totalorder %s13, 0
      %p48 = por %p46, %p47
      %p49 = scmp.ne.s32.totalorder %s35, %s36
      %p50 = scmp.eq.s32.totalorder %s14, 1
      %p51 = por %p49, %p50
      %p53 = scmp.ne.s32.totalorder %s36, %s52
      %p54 = scmp.eq.s32.totalorder %s14, 0
      %p55 = por %p53, %p54
      %s57 = sadd.s32 %s56, 1
      %p60 = scmp.eq.s32.totalorder %s8, 1
      %p61 = scmp.ne.s32.totalorder %s56, %s58
      %p62 = scmp.eq.s32.totalorder %s8, 0
      %p63 = por %p61, %p62
      %p64 = scmp.ne.s32.totalorder %s56, %s58
      %p65 = scmp.eq.s32.totalorder %s13, 1
      %p66 = por %p64, %p65
      %p67 = scmp.ne.s32.totalorder %s58, %s59
      %p68 = scmp.eq.s32.totalorder %s13, 0
      %p69 = por %p67, %p68
      %p70 = scmp.ne.s32.totalorder %s58, %s59
      %p71 = scmp.eq.s32.totalorder %s14, 1
      %p72 = por %p70, %p71
      %p74 = scmp.ne.s32.totalorder %s59, %s73
      %p75 = scmp.eq.s32.totalorder %s14, 0
      %p76 = por %p74, %p75
      %s77 = ssub.s32 %s15, %s27
      %s78 = ssub.s32 %s16, %s23
      %s79 = sor.u32 %s77, %s78
      %p80 = scmp.eq.s32.totalorder %s79, 0
      %s82 = sadd.s32 %s81, 1
      %s83 = scalar_select %p80, %s81, %s82
      %p86 = pneg %p80
      %p87 = scmp.eq.s32.totalorder %s8, 1
      %p88 = por %p86, %p87
      %p89 = scmp.ne.s32.totalorder %s81, %s84
      %p90 = scmp.eq.s32.totalorder %s8, 0
      %p91 = por %p89, %p90
      %p92 = scmp.ne.s32.totalorder %s81, %s84
      %p93 = scmp.eq.s32.totalorder %s13, 1
      %p94 = por %p92, %p93
      %p95 = scmp.ne.s32.totalorder %s84, %s85
      %p96 = scmp.eq.s32.totalorder %s13, 0
      %p97 = por %p95, %p96
      %p98 = scmp.ne.s32.totalorder %s84, %s85
      %p99 = scmp.eq.s32.totalorder %s14, 1
      %p100 = por %p98, %p99
      %p102 = scmp.ne.s32.totalorder %s85, %s101
      %p103 = scmp.eq.s32.totalorder %s14, 0
      %p104 = por %p102, %p103
      %p105 = scmp.le.s32.totalorder 1, %s8
      %p106 = scmp.lt.s32.totalorder %s8, 3
      %p107 = pnand %p105, %p106
      %p108 = pneg %p107
      // Predicated region
      $region9: #{tpu_custom_call.1} parent=5 // pred_check
        _
      $region10: #{tpu_custom_call.1} parent=5 // pred_check_branch
        %110 = sbr.rel (%p107) target = $region12
      $region11: #{tpu_custom_call.1} parent=5 // pred_region
        %s111 = ssub.s32 %s8, 1
        // Predicated region
        $region13: #{tpu_custom_call.1} parent=11 // pred_check
          %p112 = pneg %p69
        $region14: #{tpu_custom_call.1} parent=11 // pred_check_branch
          %114 = sbr.rel (%p112) target = $region16
        $region15: #{tpu_custom_call.1} parent=11 // pred_region
          _
        $region16: #{tpu_custom_call.1} parent=11 // pred_fallthru
          _
      $region12: #{tpu_custom_call.1} parent=5 // pred_fallthru
        _
      %p115 = scmp.lt.s32.totalorder %s8, 2
      // Predicated region
      $region17: #{tpu_custom_call.1} parent=5 // pred_check
        %p116 = pneg %p115
      $region18: #{tpu_custom_call.1} parent=5 // pred_check_branch
        %118 = sbr.rel (%p116) target = $region20
      $region19: #{tpu_custom_call.1} parent=5 // pred_region
        // Predicated region
        $region21: #{tpu_custom_call.1} parent=19 // pred_check
          %p119 = pneg %p42
        $region22: #{tpu_custom_call.1} parent=19 // pred_check_branch
          %121 = sbr.rel (%p119) target = $region24
        $region23: #{tpu_custom_call.1} parent=19 // pred_region
          %s122 = sand.u32 %s32, 1
          %s123 = sand.u32 %s32, 1
          %s124 = smul.addr %s123, 8
          %s125 = scalar_lea.vmem [#allocation2], %s124
          %s126 = smul.u32 2, %s15
          %s127 = smul.addr %s126, 2
          %s128 = sadd.s32 %s16, %s127
          %s129 = smul.addr %s128, 4
          %s130 = scalar_lea.vmem %s0, %s129
          // Predicated region
          $region25: #{tpu_custom_call.1} parent=23 // pred_check
            _
          $region26: #{tpu_custom_call.1} parent=23 // pred_check_branch
            %132 = sbr.rel (0) target = $region28
          $region27: #{tpu_custom_call.1} parent=23 // pred_region
            // Predicated region
            $region29: #{tpu_custom_call.1} parent=27 // pred_check
              _
            $region30: #{tpu_custom_call.1} parent=27 // pred_check_branch
              %134 = sbr.rel target = $region32
            $region31: #{tpu_custom_call.1} parent=27 // pred_region
              // Predicated region
              $region44: #{tpu_custom_call.1} parent=31 // pred_check
                _
              $region45: #{tpu_custom_call.1} parent=31 // pred_check_branch
                %151 = sbr.rel (0) target = $region47
              $region46: #{tpu_custom_call.1} parent=31 // pred_region
                loop: start=0, step=1, limit=1
                $region48: #{tpu_custom_call.1} parent=46 // loop_pre_header
                  _
                $region49: #{tpu_custom_call.1} parent=46 // loop_header
                  %s153 = sphi 0, %s157
                  %p154 = scmp.ge.s32.totalorder %s153, 1
                  %s158 = sphi %s130, %s130
                  %s159 = sphi %s125, %s125
                $region50: #{tpu_custom_call.1} parent=46 // loop_header_branch
                  %156 = sbr.rel (%p154) target = $region54
                $region51: #{tpu_custom_call.1} parent=46 // loop_body
                  _
                $region52: #{tpu_custom_call.1} parent=46 // loop_footer
                  %s157 = sadd.s32 1, %s153
                $region53: #{tpu_custom_call.1} parent=46 // loop_footer_branch
                  %152 = sbr.rel target = $region49
                $region54: #{tpu_custom_call.1} parent=46 // loop_exit
                  _
                loop: start=0, step=1, limit=1
                $region55: #{tpu_custom_call.1} parent=46 // loop_pre_header
                  _
                $region56: #{tpu_custom_call.1} parent=46 // loop_header
                  %s162 = sphi 0, %s166
                  %p163 = scmp.ge.s32.totalorder %s162, 1
                  %s167 = sphi %s130, %s130
                  %s168 = sphi %s125, %s125
                $region57: #{tpu_custom_call.1} parent=46 // loop_header_branch
                  %165 = sbr.rel (%p163) target = $region61
                $region58: #{tpu_custom_call.1} parent=46 // loop_body
                  %v169 = vld [vmem:[%s167] sm:$0xf]
                  %170 = vst [vmem:[%s168] sm:$0xf] %v169
                  %v171 = vld [vmem:[%s167 + $0x8] sm:$0xf]
                  %172 = vst [vmem:[%s168 + $0x4] sm:$0xf] %v171
                $region59: #{tpu_custom_call.1} parent=46 // loop_footer
                  %s166 = sadd.s32 1, %s162
                $region60: #{tpu_custom_call.1} parent=46 // loop_footer_branch
                  %161 = sbr.rel target = $region56
                $region61: #{tpu_custom_call.1} parent=46 // loop_exit
                  _
              $region47: #{tpu_custom_call.1} parent=31 // pred_fallthru
                _
            $region32: #{tpu_custom_call.1} parent=27 // pred_fallthru
              _
            // Predicated region
            $region33: #{tpu_custom_call.1} parent=27 // pred_check
              _
            $region34: #{tpu_custom_call.1} parent=27 // pred_check_branch
              %136 = sbr.rel (0) target = $region36
            $region35: #{tpu_custom_call.1} parent=27 // pred_region
              loop: start=0, step=1, limit=1
              $region37: #{tpu_custom_call.1} parent=35 // loop_pre_header
                _
              $region38: #{tpu_custom_call.1} parent=35 // loop_header
                %s139 = sphi 0, %s143
                %p140 = scmp.ge.s32.totalorder %s139, 1
                %s144 = sphi %s130, %s130
                %s145 = sphi %s125, %s125
              $region39: #{tpu_custom_call.1} parent=35 // loop_header_branch
                %142 = sbr.rel (%p140) target = $region43
              $region40: #{tpu_custom_call.1} parent=35 // loop_body
                %v146 = vld [vmem:[%s144] sm:$0xf]
                %147 = vst [vmem:[%s145] sm:$0xf] %v146
                %v148 = vld [vmem:[%s144 + $0x8] sm:$0xf]
                %149 = vst [vmem:[%s145 + $0x4] sm:$0xf] %v148
              $region41: #{tpu_custom_call.1} parent=35 // loop_footer
                %s143 = sadd.s32 1, %s139
              $region42: #{tpu_custom_call.1} parent=35 // loop_footer_branch
                %138 = sbr.rel target = $region38
              $region43: #{tpu_custom_call.1} parent=35 // loop_exit
                _
            $region36: #{tpu_custom_call.1} parent=27 // pred_fallthru
              _
          $region28: #{tpu_custom_call.1} parent=23 // pred_fallthru
            _
          %173 = vnop
        $region24: #{tpu_custom_call.1} parent=19 // pred_fallthru
          _
      $region20: #{tpu_custom_call.1} parent=5 // pred_fallthru
        _
      %p174 = scmp.le.s32.totalorder 1, %s8
      %p175 = scmp.lt.s32.totalorder %s8, 3
      %p176 = pnand %p174, %p175
      %p177 = pneg %p176
      // Predicated region
      $region62: #{tpu_custom_call.1} parent=5 // pred_check
        _
      $region63: #{tpu_custom_call.1} parent=5 // pred_check_branch
        %179 = sbr.rel (%p176) target = $region65
      $region64: #{tpu_custom_call.1} parent=5 // pred_region
        %s180 = ssub.s32 %s8, 1
        %s181 = sand.u32 %s35, 1
        %s182 = sand.u32 %s35, 1
        %s183 = smul.addr %s182, 8
        %s184 = scalar_lea.vmem [#allocation2], %s183
        // Predicated region
        $region66: #{tpu_custom_call.1} parent=64 // pred_check
          %p185 = pneg %p48
        $region67: #{tpu_custom_call.1} parent=64 // pred_check_branch
          %187 = sbr.rel (%p185) target = $region69
        $region68: #{tpu_custom_call.1} parent=64 // pred_region
          _
        $region69: #{tpu_custom_call.1} parent=64 // pred_fallthru
          _
        %s188 = sand.u32 %s35, 1
        %s189 = sand.u32 %s35, 1
        %s190 = smul.addr %s189, 8
        %s191 = scalar_lea.vmem [#allocation2], %s190
        %p192 = pneg %p48
        %p193 = pneg %p45
        %p194 = pneg %p69
        %p195 = pneg %p66
        %p196 = pneg %p97
        %p197 = pneg %p94
        %s198 = sand.u32 %s84, 1
        %s199 = sand.u32 %s84, 1
        %s200 = smul.addr %s199, 16
        %s201 = scalar_lea.vmem [#allocation3], %s200
        %s202 = smul.u32 2, %s17
        %s203 = smul.u32 2, %s17
        %v204 = vld [vmem:[%s184] sm:$0x7]
        %v205 = vld [vmem:[%s184 + $0x4] sm:$0x7]
        %v206 = vld [vmem:[%s1] sm:$0x3f]
        %208 = vset.pattern.permute.xlu0 0
        %209 = vperm.xlu0 %208, %v206
        %v210 = vpop.permute.xlu0 %209
        %v212 = vlaneseq
        %v213 = vshrl.u32 %v212, 7
        %v214 = vsub.s32 0, %v213
        %v215 = vrot.slane %v204, %v214
        %v216 = vlaneseq
        %v217 = vshrl.u32 %v216, 7
        %v218 = vsub.s32 0, %v217
        %v219 = vrot.slane %v205, %v218
        %v220 = vmul.f32 %v210, %v215
        %v221 = vmul.f32 %v210, %v219
        %222 = vset.pattern.permute.xlu0 1
        %223 = vperm.xlu0 %222, %v206
        %v224 = vpop.permute.xlu0 %223
        %v226 = vlaneseq
        %v227 = vshrl.u32 %v226, 7
        %v228 = vsub.s32 1, %v227
        %v229 = vrot.slane %v204, %v228
        %v230 = vlaneseq
        %v231 = vshrl.u32 %v230, 7
        %v232 = vsub.s32 1, %v231
        %v233 = vrot.slane %v205, %v232
        %v234 = vmul.f32 %v224, %v229
        %v235 = vmul.f32 %v224, %v233
        %v236 = vadd.f32 %v220, %v234
        %v237 = vadd.f32 %v221, %v235
        %238 = vset.pattern.permute.xlu0 2
        %239 = vperm.xlu0 %238, %v206
        %v240 = vpop.permute.xlu0 %239
        %v242 = vlaneseq
        %v243 = vshrl.u32 %v242, 7
        %v244 = vsub.s32 2, %v243
        %v245 = vrot.slane %v204, %v244
        %v246 = vlaneseq
        %v247 = vshrl.u32 %v246, 7
        %v248 = vsub.s32 2, %v247
        %v249 = vrot.slane %v205, %v248
        %v250 = vmul.f32 %v240, %v245
        %v251 = vmul.f32 %v240, %v249
        %v252 = vadd.f32 %v236, %v250
        %v253 = vadd.f32 %v237, %v251
        %254 = vset.pattern.permute.xlu0 3
        %255 = vperm.xlu0 %254, %v206
        %v256 = vpop.permute.xlu0 %255
        %v258 = vadd.f32 %v252, %v256
        %v259 = vadd.f32 %v253, %v256
        %v260 = vmax.f32 %v258, 0.0
        %v261 = vmax.f32 %v259, 0.0
        %262 = vst [vmem:[%s201] sm:$0x3f] %v260
        %263 = vst [vmem:[%s201 + $0x8] sm:$0x3f] %v261
        %s264 = sand.u32 %s84, 1
        %s265 = sand.u32 %s84, 1
        %s266 = smul.addr %s265, 16
        %s267 = scalar_lea.vmem [#allocation3], %s266
        // Predicated region
        $region70: #{tpu_custom_call.1} parent=64 // pred_check
          %p268 = pneg %p94
        $region71: #{tpu_custom_call.1} parent=64 // pred_check_branch
          %270 = sbr.rel (%p268) target = $region73
        $region72: #{tpu_custom_call.1} parent=64 // pred_region
          %s271 = smul.u32 2, %s17
          %s272 = smul.addr %s271, 2
          %s273 = sadd.s32 %s18, %s272
          %s274 = smul.addr %s273, 8
          %s275 = scalar_lea.vmem %s2, %s274
          // Predicated region
          $region74: #{tpu_custom_call.1} parent=72 // pred_check
            _
          $region75: #{tpu_custom_call.1} parent=72 // pred_check_branch
            %277 = sbr.rel (0) target = $region77
          $region76: #{tpu_custom_call.1} parent=72 // pred_region
            // Predicated region
            $region78: #{tpu_custom_call.1} parent=76 // pred_check
              _
            $region79: #{tpu_custom_call.1} parent=76 // pred_check_branch
              %279 = sbr.rel (0) target = $region81
            $region80: #{tpu_custom_call.1} parent=76 // pred_region
              // Predicated region
              $region93: #{tpu_custom_call.1} parent=80 // pred_check
                _
              $region94: #{tpu_custom_call.1} parent=80 // pred_check_branch
                %296 = sbr.rel (0) target = $region96
              $region95: #{tpu_custom_call.1} parent=80 // pred_region
                loop: start=0, step=1, limit=1
                $region97: #{tpu_custom_call.1} parent=95 // loop_pre_header
                  _
                $region98: #{tpu_custom_call.1} parent=95 // loop_header
                  %s298 = sphi 0, %s302
                  %p299 = scmp.ge.s32.totalorder %s298, 1
                  %s303 = sphi %s267, %s267
                  %s304 = sphi %s275, %s275
                $region99: #{tpu_custom_call.1} parent=95 // loop_header_branch
                  %301 = sbr.rel (%p299) target = $region103
                $region100: #{tpu_custom_call.1} parent=95 // loop_body
                  %v305 = vld [vmem:[%s303] sm:$0xff]
                  %306 = vst [vmem:[%s304] sm:$0xff] %v305
                  %v307 = vld [vmem:[%s303 + $0x8] sm:$0xff]
                  %308 = vst [vmem:[%s304 + $0x10] sm:$0xff] %v307
                $region101: #{tpu_custom_call.1} parent=95 // loop_footer
                  %s302 = sadd.s32 1, %s298
                $region102: #{tpu_custom_call.1} parent=95 // loop_footer_branch
                  %297 = sbr.rel target = $region98
                $region103: #{tpu_custom_call.1} parent=95 // loop_exit
                  _
              $region96: #{tpu_custom_call.1} parent=80 // pred_fallthru
                _
              // Predicated region
              $region104: #{tpu_custom_call.1} parent=80 // pred_check
                _
              $region105: #{tpu_custom_call.1} parent=80 // pred_check_branch
                %310 = sbr.rel target = $region107
              $region106: #{tpu_custom_call.1} parent=80 // pred_region
                _
              $region107: #{tpu_custom_call.1} parent=80 // pred_fallthru
                _
            $region81: #{tpu_custom_call.1} parent=76 // pred_fallthru
              _
            // Predicated region
            $region82: #{tpu_custom_call.1} parent=76 // pred_check
              _
            $region83: #{tpu_custom_call.1} parent=76 // pred_check_branch
              %281 = sbr.rel target = $region85
            $region84: #{tpu_custom_call.1} parent=76 // pred_region
              loop: start=0, step=1, limit=1
              $region86: #{tpu_custom_call.1} parent=84 // loop_pre_header
                _
              $region87: #{tpu_custom_call.1} parent=84 // loop_header
                %s284 = sphi 0, %s288
                %p285 = scmp.ge.s32.totalorder %s284, 1
                %s289 = sphi %s267, %s267
                %s290 = sphi %s275, %s275
              $region88: #{tpu_custom_call.1} parent=84 // loop_header_branch
                %287 = sbr.rel (%p285) target = $region92
              $region89: #{tpu_custom_call.1} parent=84 // loop_body
                %v291 = vld [vmem:[%s289] sm:$0xff]
                %292 = vst [vmem:[%s290] sm:$0xff] %v291
                %v293 = vld [vmem:[%s289 + $0x8] sm:$0xff]
                %294 = vst [vmem:[%s290 + $0x10] sm:$0xff] %v293
              $region90: #{tpu_custom_call.1} parent=84 // loop_footer
                %s288 = sadd.s32 1, %s284
              $region91: #{tpu_custom_call.1} parent=84 // loop_footer_branch
                %283 = sbr.rel target = $region87
              $region92: #{tpu_custom_call.1} parent=84 // loop_exit
                _
            $region85: #{tpu_custom_call.1} parent=76 // pred_fallthru
              _
          $region77: #{tpu_custom_call.1} parent=72 // pred_fallthru
            _
          %311 = vnop
        $region73: #{tpu_custom_call.1} parent=64 // pred_fallthru
          _
      $region65: #{tpu_custom_call.1} parent=5 // pred_fallthru
        _
      %p312 = scmp.le.s32.totalorder 2, %s8
      // Predicated region
      $region108: #{tpu_custom_call.1} parent=5 // pred_check
        %p313 = pneg %p312
      $region109: #{tpu_custom_call.1} parent=5 // pred_check_branch
        %315 = sbr.rel (%p313) target = $region111
      $region110: #{tpu_custom_call.1} parent=5 // pred_region
        %s316 = ssub.s32 %s8, 2
        // Predicated region
        $region112: #{tpu_custom_call.1} parent=110 // pred_check
          %p317 = pneg %p100
        $region113: #{tpu_custom_call.1} parent=110 // pred_check_branch
          %319 = sbr.rel (%p317) target = $region115
        $region114: #{tpu_custom_call.1} parent=110 // pred_region
          %s320 = sand.u32 %s85, 1
          %s321 = sand.u32 %s85, 1
          %s322 = smul.addr %s321, 16
          %s323 = scalar_lea.vmem [#allocation3], %s322
        $region115: #{tpu_custom_call.1} parent=110 // pred_fallthru
          _
      $region111: #{tpu_custom_call.1} parent=5 // pred_fallthru
        _
    $region6: #{tpu_custom_call.1} parent=1 // loop_footer
      %s12 = sadd.s32 1, %s8
    $region7: #{tpu_custom_call.1} parent=1 // loop_footer_branch
      %7 = sbr.rel target = $region3
    $region8: #{tpu_custom_call.1} parent=1 // loop_exit
      _

</llo_original>
